<compile_context>
chip_gen: v6e
topology: v6e:2x2x1
jax: 0.10.0
libtpu: 0.0.40
codegen_flags: <defaults>
</compile_context>

<pallas_src>
import functools

import jax
import jax.numpy as jnp
from jax.experimental import pallas as pl
from jax.experimental.pallas import tpu as pltpu


def _round_up(n, m):
    return ((n + m - 1) // m) * m


def _pick_tb(batch, tb_max):
    """Batch tile size: single full-dim tile for small B, else >=4 tiles of
    128-row granularity capped at tb_max (per-step-overhead amortization)."""
    if batch <= 128:
        return batch  # full-dim block: always layout-legal, grid = 1
    tb = _round_up(pl.cdiv(batch, 4), 128)   # >=4 tiles for v7x 2-TC balance
    return min(tb, max(tb_max, 128))


def nsp_kernel(x_ref, w1_ref, b1_ref, w2_ref, b2_ref, o_ref, *, nsub, sub):
    """One batch tile: logits = tanh(x @ W1 + b1) @ W2 + b2 (128 padded lanes)."""
    w1 = w1_ref[...]                       # (D, D)    bf16, VMEM-resident
    w2 = w2_ref[...]                       # (D, NOUT) bf16 (zero-padded classifier)
    d = w1.shape[0]
    nout = w2.shape[1]

    # Hoist bias broadcasts out of the unrolled sub-block loop.
    b1 = jnp.broadcast_to(b1_ref[...], (sub, d))       # f32
    b2 = jnp.broadcast_to(b2_ref[...], (sub, nout))    # f32

    # Static sub-block split: tanh (EUP) of sub-block j overlaps the MXU pass
    # of sub-block j+1 (independent chains in separate VLIW slots).
    for j in range(nsub):
        r0 = j * sub
        xj = x_ref[pl.ds(r0, sub), :].astype(jnp.bfloat16)       # per-tile cast
        h = jnp.dot(xj, w1, preferred_element_type=jnp.float32)  # f32 accum
        h = jnp.tanh(h + b1)                                      # f32 bias + tanh
        out = jnp.dot(h.astype(jnp.bfloat16), w2,
                      preferred_element_type=jnp.float32) + b2    # (sub, NOUT) f32
        o_ref[pl.ds(r0, sub), :] = out.astype(o_ref.dtype)        # bf16 store


def next_sentence_pred(x, w1, b1, w2, b2, *, tb_max=1024):
    """x: (B, D); w1: (D, D); b1: (1, D) or (D,); w2: (D, n_cls); b2: (1, n_cls) or (n_cls,).

    Weights are laid out (in, out) so the kernel computes x @ W + b.
    Returns (B, n_cls) logits in x.dtype (bf16-level accuracy, see header).
    """
    B, D = x.shape
    n_cls = w2.shape[1]
    NOUT = 128  # lane-dense padded classifier width
    assert n_cls <= NOUT, f"classifier width {n_cls} > {NOUT} not supported"

    # bf16 weights for the MXU; biases stay f32 (f32 tanh works on all chips).
    w1_bf = w1.astype(jnp.bfloat16)
    w2_p = jnp.zeros((D, NOUT), jnp.bfloat16).at[:, :n_cls].set(w2.astype(jnp.bfloat16))
    b1_f = jnp.reshape(b1, (1, D)).astype(jnp.float32)
    b2_p = jnp.zeros((1, NOUT), jnp.float32).at[:, :n_cls].set(
        jnp.reshape(b2, (1, n_cls)).astype(jnp.float32))

    tb = _pick_tb(B, tb_max)
    grid = (pl.cdiv(B, tb),)        # ragged last tile handled by masked stores

    # Fixed small sub-block for MXU/EUP overlap without blowing up live ranges.
    if tb >= 256 and tb % 128 == 0:
        sub = 128
    else:
        sub = tb
    nsub = tb // sub

    cost = pl.CostEstimate(
        flops=2 * B * D * (D + NOUT),
        transcendentals=B * D,
        bytes_accessed=(x.size * x.dtype.itemsize      # x read (native dtype)
                        + w1_bf.size * 2 + w2_p.size * 2
                        + b1_f.size * 4 + b2_p.size * 4
                        + B * NOUT * 2),                # bf16 writeback
    )

    out_padded = pl.pallas_call(
        functools.partial(nsp_kernel, nsub=nsub, sub=sub),
        out_shape=jax.ShapeDtypeStruct((B, NOUT), jnp.bfloat16),
        grid=grid,
        in_specs=[
            pl.BlockSpec((tb, D), lambda i: (i, 0)),     # x tile: pipelined over batch
            pl.BlockSpec((D, D), lambda i: (0, 0)),      # W1: constant index -> resident
            pl.BlockSpec((1, D), lambda i: (0, 0)),      # b1
            pl.BlockSpec((D, NOUT), lambda i: (0, 0)),   # W2 (lane-padded)
            pl.BlockSpec((1, NOUT), lambda i: (0, 0)),   # b2 (lane-padded)
        ],
        out_specs=pl.BlockSpec((tb, NOUT), lambda i: (i, 0)),
        compiler_params=pltpu.CompilerParams(
            dimension_semantics=("parallel",),           # megacore sharding on v7x
        ),
        cost_estimate=cost,
    )(x, w1_bf, b1_f, w2_p, b2_p)

    # Drop the padded classifier lanes; cast tiny (B, n_cls) slab to x.dtype.
    return out_padded[:, :n_cls].astype(x.dtype)


def init_params(key, embed_dim, n_cls=2):
    """Deterministic init mirroring nn.Linear shapes (weights kept as (in, out))."""
    k1, k2, k3, k4 = jax.random.split(key, 4)
    bound = 1.0 / jnp.sqrt(embed_dim)
    w1 = jax.random.uniform(k1, (embed_dim, embed_dim), jnp.float32, -bound, bound)
    b1 = jax.random.uniform(k2, (1, embed_dim), jnp.float32, -bound, bound)
    w2 = jax.random.uniform(k3, (embed_dim, n_cls), jnp.float32, -bound, bound)
    b2 = jax.random.uniform(k4, (1, n_cls), jnp.float32, -bound, bound)
    return w1, b1, w2, b2


if __name__ == "__main__":
    key = jax.random.PRNGKey(0)
    kx, kp = jax.random.split(key)

    batch = 8
    embed_dim = 32  # small stand-in for 768

    x = jax.random.normal(kx, (batch, embed_dim), dtype=jnp.float32)
    w1, b1, w2, b2 = init_params(kp, embed_dim)

    out = next_sentence_pred(x, w1, b1, w2, b2)
    out = jax.block_until_ready(out)

    # Reference (same math as the PyTorch module, f32). Kernel uses bf16
    # operands / bf16 output with f32 accumulation -> bf16-level tolerance.
    ref = jnp.tanh(x @ w1 + b1) @ w2 + b2
    assert out.shape == (batch, 2)
    assert jnp.allclose(out, ref, atol=5e-2, rtol=5e-2), (
        f"max abs err {jnp.max(jnp.abs(out - ref))}")

    print("KERNEL_OK")
</pallas_src>

<mosaic_0001>
module attributes {stable_mosaic.version = 11 : i64} {
  func.func @nsp_kernel(%arg0: i32, %arg1: memref<8x32xf32, #tpu.memory_space<vmem>>, %arg2: memref<32x32xbf16, #tpu.memory_space<vmem>>, %arg3: memref<1x32xf32, #tpu.memory_space<vmem>>, %arg4: memref<32x128xbf16, #tpu.memory_space<vmem>>, %arg5: memref<1x128xf32, #tpu.memory_space<vmem>>, %arg6: memref<8x128xbf16, #tpu.memory_space<vmem>>) attributes {dimension_semantics = [#tpu.dimension_semantics<parallel>], iteration_bounds = array<i64: 1>, scalar_prefetch = 0 : i64, scratch_operands = 0 : i64, tpu.core_type = #tpu.core_type<tc>, window_params = [{transform_indices = @transform_0, window_bounds = array<i64: 8, 32>}, {pipeline_mode = #tpu.pipeline_mode<synchronous>, transform_indices = @transform_1, window_bounds = array<i64: 32, 32>}, {pipeline_mode = #tpu.pipeline_mode<synchronous>, transform_indices = @transform_2, window_bounds = array<i64: 1, 32>}, {pipeline_mode = #tpu.pipeline_mode<synchronous>, transform_indices = @transform_3, window_bounds = array<i64: 32, 128>}, {pipeline_mode = #tpu.pipeline_mode<synchronous>, transform_indices = @transform_4, window_bounds = array<i64: 1, 128>}, {transform_indices = @transform_5, window_bounds = array<i64: 8, 128>}]} {
    %c0 = arith.constant 0 : index
    %c0_0 = arith.constant 0 : index
    %0 = vector.load %arg2[%c0, %c0_0] : memref<32x32xbf16, #tpu.memory_space<vmem>>, vector<32x32xbf16>
    %c0_1 = arith.constant 0 : index
    %c0_2 = arith.constant 0 : index
    %1 = vector.load %arg4[%c0_1, %c0_2] : memref<32x128xbf16, #tpu.memory_space<vmem>>, vector<32x128xbf16>
    %c0_3 = arith.constant 0 : index
    %c0_4 = arith.constant 0 : index
    %2 = vector.load %arg3[%c0_3, %c0_4] : memref<1x32xf32, #tpu.memory_space<vmem>>, vector<1x32xf32>
    %3 = vector.shape_cast %2 : vector<1x32xf32> to vector<1x32xf32>
    %4 = vector.broadcast %3 : vector<1x32xf32> to vector<8x32xf32>
    %c0_5 = arith.constant 0 : index
    %c0_6 = arith.constant 0 : index
    %5 = vector.load %arg5[%c0_5, %c0_6] : memref<1x128xf32, #tpu.memory_space<vmem>>, vector<1x128xf32>
    %6 = vector.shape_cast %5 : vector<1x128xf32> to vector<1x128xf32>
    %7 = vector.broadcast %6 : vector<1x128xf32> to vector<8x128xf32>
    %c0_7 = arith.constant 0 : index
    %c0_8 = arith.constant 0 : index
    %8 = vector.load %arg1[%c0_7, %c0_8] : memref<8x32xf32, #tpu.memory_space<vmem>>, vector<8x32xf32>
    %9 = arith.truncf %8 : vector<8x32xf32> to vector<8x32xbf16>
    %cst = arith.constant dense<0.000000e+00> : vector<8x32xf32>
    %10 = tpu.matmul %9, %0, %cst {dimension_numbers = #tpu.dot_dimension_numbers<[1], [0], [0], [1], [0, 0, 1, 1], [], []>} : vector<8x32xbf16>, vector<32x32xbf16>, vector<8x32xf32> -> vector<8x32xf32>
    %11 = arith.addf %10, %4 : vector<8x32xf32>
    %12 = math.tanh %11 : vector<8x32xf32>
    %13 = arith.truncf %12 : vector<8x32xf32> to vector<8x32xbf16>
    %cst_9 = arith.constant dense<0.000000e+00> : vector<8x128xf32>
    %14 = tpu.matmul %13, %1, %cst_9 {dimension_numbers = #tpu.dot_dimension_numbers<[1], [0], [0], [1], [0, 0, 1, 1], [], []>} : vector<8x32xbf16>, vector<32x128xbf16>, vector<8x128xf32> -> vector<8x128xf32>
    %15 = arith.addf %14, %7 : vector<8x128xf32>
    %16 = arith.truncf %15 : vector<8x128xf32> to vector<8x128xbf16>
    %c0_10 = arith.constant 0 : index
    %c0_11 = arith.constant 0 : index
    %17 = vector.load %arg6[%c0_10, %c0_11] : memref<8x128xbf16, #tpu.memory_space<vmem>>, vector<8x128xbf16>
    tpu.vector_store %arg6[%c0_10, %c0_11], %16 {strides = array<i32>} : memref<8x128xbf16, #tpu.memory_space<vmem>>, vector<8x128xbf16>,
    return
  }
  func.func @transform_0(%arg0: i32) -> (i32, i32) {
    %c0_i32 = arith.constant 0 : i32
    %c0_i32_0 = arith.constant 0 : i32
    return %arg0, %c0_i32 : i32, i32
  }
  func.func @transform_1(%arg0: i32) -> (i32, i32) {
    %c0_i32 = arith.constant 0 : i32
    %c0_i32_0 = arith.constant 0 : i32
    %c0_i32_1 = arith.constant 0 : i32
    return %c0_i32, %c0_i32_0 : i32, i32
  }
  func.func @transform_2(%arg0: i32) -> (i32, i32) {
    %c0_i32 = arith.constant 0 : i32
    %c0_i32_0 = arith.constant 0 : i32
    %c0_i32_1 = arith.constant 0 : i32
    return %c0_i32, %c0_i32_0 : i32, i32
  }
  func.func @transform_3(%arg0: i32) -> (i32, i32) {
    %c0_i32 = arith.constant 0 : i32
    %c0_i32_0 = arith.constant 0 : i32
    %c0_i32_1 = arith.constant 0 : i32
    return %c0_i32, %c0_i32_0 : i32, i32
  }
  func.func @transform_4(%arg0: i32) -> (i32, i32) {
    %c0_i32 = arith.constant 0 : i32
    %c0_i32_0 = arith.constant 0 : i32
    %c0_i32_1 = arith.constant 0 : i32
    return %c0_i32, %c0_i32_0 : i32, i32
  }
  func.func @transform_5(%arg0: i32) -> (i32, i32) {
    %c0_i32 = arith.constant 0 : i32
    %c0_i32_0 = arith.constant 0 : i32
    return %arg0, %c0_i32 : i32, i32
  }
}

</mosaic_0001>

<llo_original>
// kernel: tpu_custom_call.1
$region0: #{tpu_custom_call.1}
  #allocation0 [shape = 'u32[]', space=smem, size = 0x4, offset = 0x4, fixed_abs, tag = 'smem constant byte address 0x4 - core index']
  #allocation1 [shape = 'u32[144,128]{1,0:T(1,128)}', space=vmem, size = 0x12000, scoped, tag = 'internal scratch']
  %s0 = inlined_call_operand.hbm [shape: f32[8,32], index: 0, kind: input, shape index: {}]
  %s1 = inlined_call_operand.hbm [shape: bf16[32,32], index: 1, kind: input, shape index: {}]
  %s2 = inlined_call_operand.vmem [shape: f32[1,32], index: 2, kind: input, shape index: {}]
  %s3 = inlined_call_operand.hbm [shape: bf16[32,128], index: 3, kind: input, shape index: {}]
  %s4 = inlined_call_operand.vmem [shape: f32[1,128], index: 4, kind: input, shape index: {}]
  %s5 = inlined_call_operand.hbm [shape: bf16[8,128], index: 5, kind: output, shape index: {}]
  %s6 = sld [smem:[#allocation0]]
  $region42: #{tpu_custom_call.1} parent=0
    _
  %s8 = ssub.s32 1, %s6
  %s9 = scalar_select 0, %s8, %s6
  $region1: #{tpu_custom_call.1} parent=0
    #allocation2 [shape = 'u8[4096]{0}', space=vmem, size = 0x1000, scoped, tag = 'input window, operand 0, single buffered']
    #allocation3 [shape = 's32[1]{0}', space=sflag, size = 0x4, scoped, tag = 'scoped memory for tpu_custom_call.1']
    #allocation4 [shape = 's32[1]{0}', space=sflag, size = 0x4, scoped, tag = 'scoped memory for tpu_custom_call.1']
    #allocation5 [shape = 'u8[8192]{0}', space=vmem, size = 0x2000, scoped, tag = 'input window, operand 1, single buffered']
    #allocation6 [shape = 's32[1]{0}', space=sflag, size = 0x4, scoped, tag = 'scoped memory for tpu_custom_call.1']
    #allocation7 [shape = 'u8[8192]{0}', space=vmem, size = 0x2000, scoped, tag = 'input window, operand 3, single buffered']
    #allocation8 [shape = 'u8[2048]{0}', space=vmem, size = 0x800, scoped, tag = 'output window, operand 0, single buffered']
    %10 = vsyncpa [#allocation3], 0
    %11 = vsyncpa [#allocation6], 0
    %12 = vsyncpa [#allocation4], 0
    // Predicated region
    $region2: #{tpu_custom_call.1} parent=1 // pred_check
      _
    $region3: #{tpu_custom_call.1} parent=1 // pred_check_branch
      %14 = sbr.rel (0) target = $region5
    $region4: #{tpu_custom_call.1} parent=1 // pred_region
      %s16 = ssub.s32 128, 128
      %17 = vsyncadd [#allocation3], %s16
      %s19 = sshll.u32 [#allocation2], 4
      %s20 = int_to_ptr.vmem [resolvable:$true] %s19
      %22 = dma.hbm_to_vmem [thread:$0]  %s0, 128, %s20, [#allocation3]
    $region5: #{tpu_custom_call.1} parent=1 // pred_fallthru
      _
    // Predicated region
    $region6: #{tpu_custom_call.1} parent=1 // pred_check
      _
    $region7: #{tpu_custom_call.1} parent=1 // pred_check_branch
      %24 = sbr.rel (0) target = $region9
    $region8: #{tpu_custom_call.1} parent=1 // pred_region
      %s26 = ssub.s32 256, 256
      %27 = vsyncadd [#allocation6], %s26
      %s28 = sshll.u32 [#allocation5], 4
      %s29 = int_to_ptr.vmem [resolvable:$true] %s28
      %34 = dma.hbm_to_vmem [thread:$0]  %s1, 256, %s29, [#allocation6], 64, 64, 4
    $region9: #{tpu_custom_call.1} parent=1 // pred_fallthru
      _
    // Predicated region
    $region10: #{tpu_custom_call.1} parent=1 // pred_check
      _
    $region11: #{tpu_custom_call.1} parent=1 // pred_check_branch
      %36 = sbr.rel (0) target = $region13
    $region12: #{tpu_custom_call.1} parent=1 // pred_region
      _
    $region13: #{tpu_custom_call.1} parent=1 // pred_fallthru
      _
    // Predicated region
    $region14: #{tpu_custom_call.1} parent=1 // pred_check
      _
    $region15: #{tpu_custom_call.1} parent=1 // pred_check_branch
      %38 = sbr.rel (0) target = $region17
    $region16: #{tpu_custom_call.1} parent=1 // pred_region
      %s40 = ssub.s32 256, 256
      %41 = vsyncadd [#allocation6], %s40
      %s42 = sshll.u32 [#allocation7], 4
      %s43 = int_to_ptr.vmem [resolvable:$true] %s42
      %48 = dma.hbm_to_vmem [thread:$0]  %s3, 256, %s43, [#allocation6], 64, 64, 4
    $region17: #{tpu_custom_call.1} parent=1 // pred_fallthru
      _
    // Predicated region
    $region18: #{tpu_custom_call.1} parent=1 // pred_check
      _
    $region19: #{tpu_custom_call.1} parent=1 // pred_check_branch
      %50 = sbr.rel (0) target = $region21
    $region20: #{tpu_custom_call.1} parent=1 // pred_region
      _
    $region21: #{tpu_custom_call.1} parent=1 // pred_fallthru
      _
    // Predicated region
    $region22: #{tpu_custom_call.1} parent=1 // pred_check
      _
    $region23: #{tpu_custom_call.1} parent=1 // pred_check_branch
      %52 = sbr.rel (0) target = $region25
    $region24: #{tpu_custom_call.1} parent=1 // pred_region
      %53 = dma.done [#allocation3], 128
    $region25: #{tpu_custom_call.1} parent=1 // pred_fallthru
      _
    // Predicated region
    $region26: #{tpu_custom_call.1} parent=1 // pred_check
      _
    $region27: #{tpu_custom_call.1} parent=1 // pred_check_branch
      %55 = sbr.rel (0) target = $region29
    $region28: #{tpu_custom_call.1} parent=1 // pred_region
      %56 = dma.done [#allocation6], 256
    $region29: #{tpu_custom_call.1} parent=1 // pred_fallthru
      _
    // Predicated region
    $region30: #{tpu_custom_call.1} parent=1 // pred_check
      _
    $region31: #{tpu_custom_call.1} parent=1 // pred_check_branch
      %58 = sbr.rel (0) target = $region33
    $region32: #{tpu_custom_call.1} parent=1 // pred_region
      %59 = dma.done [#allocation6], 256
    $region33: #{tpu_custom_call.1} parent=1 // pred_fallthru
      _
    %v61 = vld [vmem:[#allocation5] sm:$0xf]
    %v62 = vld [vmem:[#allocation5 + $0x4] sm:$0xf]
    %v63 = vld [vmem:[#allocation5 + $0x8] sm:$0xf]
    %v64 = vld [vmem:[#allocation5 + $0xc] sm:$0xf]
    %v65 = vld [vmem:[#allocation7] sm:$0xf]
    %v66 = vld [vmem:[#allocation7 + $0x4] sm:$0xf]
    %v67 = vld [vmem:[#allocation7 + $0x8] sm:$0xf]
    %v68 = vld [vmem:[#allocation7 + $0xc] sm:$0xf]
    %v69 = vld [vmem:[%s2] sm:$0x1]
    %v71 = vlaneseq
    %v72 = vshrl.u32 %v71, 7
    %v73 = vsub.s32 0, %v72
    %v74 = vrot.slane %v69, %v73
    %v76 = vld [vmem:[%s4] sm:$0x1]
    %v78 = vlaneseq
    %v79 = vshrl.u32 %v78, 7
    %v80 = vsub.s32 0, %v79
    %v81 = vrot.slane %v76, %v80
    %v83 = vld [vmem:[#allocation2] sm:$0xff]
    %v84 = vpack.c.bf16 %v83, %v83
    %v89 = vunpack.c.l.b16 %v61
    %v90 = vunpack.c.l.b16 %v62
    %v91 = vunpack.c.l.b16 %v63
    %v92 = vunpack.c.l.b16 %v64
    %v93 = vpack.c.b16 %v90, %v89
    %v94 = vpack.c.b16 %v92, %v91
    %vm97 = vcmask 261120
    %v99 = vsel %vm97, %v84, 0
    %101 = vmatprep.subr.bf16.mxu0 0
    %102 = vmatpush1.bf16.msra.mxu0 0
    %103 = vmatprep.subr.bf16.mxu0 0
    %104 = vmatpush1.bf16.msra.mxu0 0
    %105 = vmatprep.subr.bf16.mxu0 0
    %106 = vmatpush1.bf16.msra.mxu0 0
    %107 = vmatprep.subr.bf16.mxu0 0
    %108 = vmatpush1.bf16.msra.mxu0 0
    %109 = vmatprep.subr.bf16.mxu0 0
    %110 = vmatpush1.bf16.msra.mxu0 0
    %111 = vmatprep.subr.bf16.mxu0 0
    %112 = vmatpush1.bf16.msra.mxu0 0
    %113 = vmatprep.subr.bf16.mxu0 0
    %114 = vmatpush1.bf16.msra.mxu0 %v94
    %115 = vmatprep.subr.bf16.mxu0 0
    %116 = vmatpush1.bf16.msra.mxu0 %v93
    %117 = vmatprep.subr.bf16.mxu0 0
    %118 = vmatpush2.bf16.msra.mxu0 0
    %119 = vmatprep.subr.bf16.mxu0 0
    %120 = vmatpush2.bf16.msra.mxu0 0
    %121 = vmatprep.subr.bf16.mxu0 0
    %122 = vmatpush2.bf16.msra.mxu0 0
    %123 = vmatprep.subr.bf16.mxu0 0
    %124 = vmatpush2.bf16.msra.mxu0 0
    %125 = vmatprep.subr.bf16.mxu0 0
    %126 = vmatpush2.bf16.msra.mxu0 0
    %127 = vmatprep.subr.bf16.mxu0 0
    %128 = vmatpush2.bf16.msra.mxu0 0
    %129 = vmatprep.subr.bf16.mxu0 0
    %130 = vmatpush2.bf16.msra.mxu0 0
    %131 = vmatprep.subr.bf16.mxu0 0
    %132 = vmatpush2.bf16.msra.mxu0 0
    %133 = vmatprep.mubr.bf16.mxu0 0
    %134 = vmatmul.mubr.bf16.gmra.mxu0 %v99
    %v135 = vpop.f32.mrf.mxu0
    %v136 = vadd.f32 %v74, %v135
    %v137 = vpop.f32.mrf.mxu0
    %v138 = vpop.f32.mrf.mxu0
    %v139 = vpop.f32.mrf.mxu0
    %140 = vdwg.mxu0
    %v141 = vtanh.pop %v136
    %v142 = vpack.c.bf16 %v141, %v141
    %v147 = vunpack.c.l.b16 %v65
    %v148 = vunpack.c.l.b16 %v66
    %v149 = vunpack.c.l.b16 %v67
    %v150 = vunpack.c.l.b16 %v68
    %v151 = vpack.c.b16 %v148, %v147
    %v152 = vpack.c.b16 %v150, %v149
    %v156 = vsel %vm97, %v142, 0
    %158 = vmatprep.subr.bf16.mxu0 0
    %159 = vmatpush1.bf16.msra.mxu0 0
    %160 = vmatprep.subr.bf16.mxu0 0
    %161 = vmatpush1.bf16.msra.mxu0 0
    %162 = vmatprep.subr.bf16.mxu0 0
    %163 = vmatpush1.bf16.msra.mxu0 0
    %164 = vmatprep.subr.bf16.mxu0 0
    %165 = vmatpush1.bf16.msra.mxu0 0
    %166 = vmatprep.subr.bf16.mxu0 0
    %167 = vmatpush1.bf16.msra.mxu0 0
    %168 = vmatprep.subr.bf16.mxu0 0
    %169 = vmatpush1.bf16.msra.mxu0 0
    %170 = vmatprep.subr.bf16.mxu0 0
    %171 = vmatpush1.bf16.msra.mxu0 %v152
    %172 = vmatprep.subr.bf16.mxu0 0
    %173 = vmatpush1.bf16.msra.mxu0 %v151
    %174 = vmatprep.subr.bf16.mxu0 0
    %175 = vmatpush2.bf16.msra.mxu0 0
    %176 = vmatprep.subr.bf16.mxu0 0
    %177 = vmatpush2.bf16.msra.mxu0 0
    %178 = vmatprep.subr.bf16.mxu0 0
    %179 = vmatpush2.bf16.msra.mxu0 0
    %180 = vmatprep.subr.bf16.mxu0 0
    %181 = vmatpush2.bf16.msra.mxu0 0
    %182 = vmatprep.subr.bf16.mxu0 0
    %183 = vmatpush2.bf16.msra.mxu0 0
    %184 = vmatprep.subr.bf16.mxu0 0
    %185 = vmatpush2.bf16.msra.mxu0 0
    %186 = vmatprep.subr.bf16.mxu0 0
    %187 = vmatpush2.bf16.msra.mxu0 0
    %188 = vmatprep.subr.bf16.mxu0 0
    %189 = vmatpush2.bf16.msra.mxu0 0
    %190 = vmatprep.mubr.bf16.mxu0 0
    %191 = vmatmul.mubr.bf16.gmra.mxu0 %v156
    %v192 = vpop.f32.mrf.mxu0
    %v193 = vadd.f32 %v81, %v192
    %v194 = vpop.f32.mrf.mxu0
    %v195 = vpop.f32.mrf.mxu0
    %v196 = vpop.f32.mrf.mxu0
    %197 = vdwg.mxu0
    %v198 = vpack.c.bf16 %v193, %v193
    %199 = vst [vmem:[#allocation8] sm:$0xf] %v198
    // Predicated region
    $region34: #{tpu_custom_call.1} parent=1 // pred_check
      _
    $region35: #{tpu_custom_call.1} parent=1 // pred_check_branch
      %201 = sbr.rel (0) target = $region37
    $region36: #{tpu_custom_call.1} parent=1 // pred_region
      %s203 = ssub.s32 64, 64
      %204 = vsyncadd [#allocation4], %s203
      %s206 = sshll.u32 [#allocation8], 4
      %s207 = int_to_ptr.vmem [resolvable:$true] %s206
      %209 = dma.vmem_to_hbm [thread:$0]  %s207, 64, %s5, [#allocation4]
    $region37: #{tpu_custom_call.1} parent=1 // pred_fallthru
      _
    // Predicated region
    $region38: #{tpu_custom_call.1} parent=1 // pred_check
      _
    $region39: #{tpu_custom_call.1} parent=1 // pred_check_branch
      %211 = sbr.rel (0) target = $region41
    $region40: #{tpu_custom_call.1} parent=1 // pred_region
      %212 = dma.done [#allocation4], 64
    $region41: #{tpu_custom_call.1} parent=1 // pred_fallthru
      _
    %213 = vsyncpa [#allocation3], 1
    %214 = vsyncpa [#allocation6], 1
    %215 = vsyncpa [#allocation4], 1

</llo_original>
